<compile_context>
chip_gen: v7x
topology: tpu7x:2x2x1
jax: 0.10.0
libtpu: 0.0.40
codegen_flags: <defaults>
</compile_context>

<pallas_src>
import functools
import math

import jax
import jax.numpy as jnp
from jax import lax
from jax.experimental import pallas as pl
from jax.experimental.pallas import tpu as pltpu

EPS = 1e-7
RECONSTRUCTION_WEIGHT = 0.01   # module default; this loss has no learnable params
_NEG_PAD = -1e30               # finite "minus infinity" for padded log-hazards


# ----------------------------------------------------------------------------
# Cox proportional-hazards kernel (blocked cumsum)
# ----------------------------------------------------------------------------
def _cox_kernel(logh_ref, events_ref, out_ref, *, eps):
    """Inputs are (nb, 128) f32, sorted by duration descending (row-major order),
    padded with (_NEG_PAD, 0) pairs so padded entries contribute exp()->0 and
    event 0."""
    lh = logh_ref[...]                       # (nb, 128)
    ev = events_ref[...]                     # (nb, 128)
    nb = lh.shape[0]

    gamma = jnp.max(lh)
    ex = jnp.exp(lh - gamma)                 # padded entries underflow to 0

    # Within-row inclusive prefix sums via one fixed 128x128 lower-tri on the MXU.
    q = lax.broadcasted_iota(jnp.int32, (128, 128), 0)   # source column
    p = lax.broadcasted_iota(jnp.int32, (128, 128), 1)   # prefix position
    tri = (q <= p).astype(jnp.float32)                   # 64 KiB, O(1) in B
    prefix = jnp.dot(ex, tri, preferred_element_type=jnp.float32)   # (nb, 128)

    # Cross-row carries: carry[r] = sum of all rows r' < r.
    row_tot = jnp.sum(ex, axis=-1, keepdims=True)        # (nb, 1)
    if nb == 1:
        carry = jnp.zeros_like(row_tot)
    else:
        rr = lax.broadcasted_iota(jnp.int32, (nb, nb), 0)   # dest row r
        rs = lax.broadcasted_iota(jnp.int32, (nb, nb), 1)   # source row r'
        strict = (rs < rr).astype(jnp.float32)
        carry = jnp.dot(strict, row_tot, preferred_element_type=jnp.float32)

    cs = prefix + carry                                   # inclusive cumsum
    log_cumsum_h = jnp.log(cs + eps) + gamma

    ev_sum = jnp.sum(ev)
    denom = jnp.where(ev_sum == 0.0, 1.0, ev_sum)
    surv = -jnp.sum((lh - log_cumsum_h) * ev) / denom
    out_ref[...] = jnp.where(ev_sum == 0.0, 0.0, surv).reshape(1, 1)


def _cox_loss(predictions, targets):
    durations = targets[:, 0].astype(jnp.float32)
    events = targets[:, 1].astype(jnp.float32)
    log_h = predictions.reshape(-1).astype(jnp.float32)
    b = log_h.shape[0]

    # Glue: sort by duration descending.  Ties assumed distinct (continuous
    # durations), matching torch.sort(descending=True) on distinct values.
    order = jnp.argsort(-durations)
    log_h_s = log_h[order]
    events_s = events[order]

    nb = max(1, -(-b // 128))
    pad = nb * 128 - b
    if pad:
        log_h_s = jnp.concatenate([log_h_s, jnp.full((pad,), _NEG_PAD, jnp.float32)])
        events_s = jnp.concatenate([events_s, jnp.zeros((pad,), jnp.float32)])
    lh2 = log_h_s.reshape(nb, 128)
    ev2 = events_s.reshape(nb, 128)

    vmem = pl.BlockSpec(memory_space=pltpu.MemorySpace.VMEM)
    out = pl.pallas_call(
        functools.partial(_cox_kernel, eps=EPS),
        out_shape=jax.ShapeDtypeStruct((1, 1), jnp.float32),
        in_specs=[vmem, vmem],
        out_specs=vmem,
    )(lh2, ev2)
    return out[0, 0]


# ----------------------------------------------------------------------------
# Masked multimodal reconstruction partials kernel (tiled over batch rows)
# ----------------------------------------------------------------------------
def _recon_partials_kernel(mask_ref, *refs, n_mod, d):
    """Per batch-tile partials.

    mask_ref:   (rows, n_mod) f32 {0,1}
    refs[:n_mod]        -> recon_t blocks, (rows, n_src*d), native dtype
    refs[n_mod:2*n_mod] -> target_t blocks, (rows, d), native dtype
    refs[2*n_mod]       -> output block (1, 1, 2*n_mod):
                           [:n_mod]  masked sum of per-(b, m) MSE (already /d)
                           [n_mod:]  valid (b, m) pair counts
    """
    recon_refs = refs[:n_mod]
    rtgt_refs = refs[n_mod:2 * n_mod]
    out_ref = refs[2 * n_mod]

    mask = mask_ref[...].astype(jnp.float32)                  # (rows, n_mod)
    row_mask_sum = jnp.sum(mask, axis=-1, keepdims=True)      # (rows, 1), hoisted
    inv_d = 1.0 / float(d)

    sums = []
    counts = []
    for t in range(n_mod):
        recon = recon_refs[t][...].astype(jnp.float32)        # (rows, n_src*d)
        tgt = rtgt_refs[t][...].astype(jnp.float32)           # (rows, d)
        n_src = recon.shape[1] // d
        w_t = mask[:, t:t + 1]                                # target modality present

        u_t = None                                            # per-row masked SSE
        for m in range(n_src):
            diff = recon[:, m * d:(m + 1) * d] - tgt          # (rows, d) dense
            contrib = jnp.sum(diff * diff, axis=-1, keepdims=True) * mask[:, m:m + 1]
            u_t = contrib if u_t is None else u_t + contrib

        sums.append((jnp.sum(u_t * w_t) * inv_d).reshape(1, 1))
        counts.append(jnp.sum(row_mask_sum * w_t).reshape(1, 1))

    out_ref[...] = jnp.concatenate(sums + counts, axis=-1).reshape(1, 1, 2 * n_mod)


def _pick_row_tile(n_rows, bytes_per_row, budget_bytes=12 * 1024 * 1024, max_rows=1024):
    """Largest batch tile that divides n_rows, is a multiple of 8 (or the full
    dim) and keeps the double-buffered working set under budget."""
    cap = max(8, min(max_rows, budget_bytes // max(1, 2 * bytes_per_row)))
    if n_rows <= cap:
        return n_rows
    for t in range(cap, 7, -1):
        if n_rows % t == 0 and t % 8 == 0:
            return t
    # TODO(synk): pad the batch to a multiple of 8 for awkward (e.g. prime) sizes
    return n_rows


def _reconstruction_loss(reconstructions, reconstruction_targets, modality_mask,
                         block_rows=None):
    n_mod = len(reconstructions)
    b, n_src, d = reconstructions[0].shape

    # Free, contiguous reshapes; keep native dtypes (cast to f32 inside the kernel).
    recon2d = [r.reshape(b, n_src * d) for r in reconstructions]
    rtgts = list(reconstruction_targets)
    mask_f = modality_mask.astype(jnp.float32)                # tiny (B, n_mod)

    bytes_per_row = sum(n_src * d * jnp.dtype(r.dtype).itemsize for r in reconstructions)
    bytes_per_row += sum(d * jnp.dtype(t.dtype).itemsize for t in reconstruction_targets)
    bytes_per_row += n_mod * 4

    if block_rows is not None and b % int(block_rows) == 0 and \
            (int(block_rows) % 8 == 0 or int(block_rows) == b):
        tb = int(block_rows)
    else:
        tb = _pick_row_tile(b, bytes_per_row)
    num_tiles = b // tb

    total_in_bytes = sum(int(math.prod(a.shape)) * jnp.dtype(a.dtype).itemsize
                         for a in ([mask_f] + recon2d + rtgts))
    cost = pl.CostEstimate(
        flops=int(3 * n_mod * n_src * b * d),
        transcendentals=0,
        bytes_accessed=int(total_in_bytes + num_tiles * 2 * n_mod * 4))

    in_specs = [pl.BlockSpec((tb, mask_f.shape[1]), lambda bi: (bi, 0))]
    in_specs += [pl.BlockSpec((tb, n_src * d), lambda bi: (bi, 0)) for _ in range(n_mod)]
    in_specs += [pl.BlockSpec((tb, d), lambda bi: (bi, 0)) for _ in range(n_mod)]

    partials = pl.pallas_call(
        functools.partial(_recon_partials_kernel, n_mod=n_mod, d=d),
        grid=(num_tiles,),
        out_shape=jax.ShapeDtypeStruct((num_tiles, 1, 2 * n_mod), jnp.float32),
        in_specs=in_specs,
        out_specs=pl.BlockSpec((1, 1, 2 * n_mod), lambda bi: (bi, 0, 0)),
        compiler_params=pltpu.CompilerParams(
            dimension_semantics=("parallel",),
            vmem_limit_bytes=32 * 1024 * 1024),
        cost_estimate=cost,
    )(mask_f, *recon2d, *rtgts)

    # Tiny O(num_tiles * n_mod) finalize in plain JAX (scalar work).
    part = partials.reshape(num_tiles, 2 * n_mod)
    sums = jnp.sum(part[:, :n_mod], axis=0)          # masked mean-over-D sums per t
    valid = jnp.sum(part[:, n_mod:], axis=0)         # valid pair counts per t
    has = valid > 0.0
    per_t = jnp.where(has, sums / jnp.where(has, valid, 1.0), 0.0)
    n_valid = jnp.sum(has.astype(jnp.float32))
    return jnp.where(n_valid > 0.0, jnp.sum(per_t) / jnp.where(n_valid > 0.0, n_valid, 1.0), 0.0)


# ----------------------------------------------------------------------------
# Public wrapper (mirrors MultimodalSurvivalLoss.forward)
# ----------------------------------------------------------------------------
def multimodal_survival_loss(logits, targets,
                             reconstruction_weight=RECONSTRUCTION_WEIGHT,
                             block_rows=None):
    if isinstance(logits, tuple):
        predictions, reconstructions, reconstruction_targets, modality_mask = logits
    else:
        predictions, reconstructions = logits, None

    surv = _cox_loss(predictions, targets)
    if reconstructions is None:
        return surv

    recon = _reconstruction_loss(reconstructions, reconstruction_targets,
                                 modality_mask, block_rows=block_rows)
    return surv + reconstruction_weight * recon


# ----------------------------------------------------------------------------
# Pure-JAX references (mirror the PyTorch forward) for correctness checks
# ----------------------------------------------------------------------------
def _cox_ref(predictions, targets, eps=EPS):
    durations = targets[:, 0]
    events = targets[:, 1].astype(jnp.float32)
    order = jnp.argsort(-durations)
    ev = events[order]
    lh = predictions.reshape(-1).astype(jnp.float32)[order]
    gamma = lh.max()
    log_cumsum = jnp.log(jnp.cumsum(jnp.exp(lh - gamma)) + eps) + gamma
    ev_sum = ev.sum()
    return jnp.where(ev_sum == 0.0, 0.0,
                     -jnp.sum((lh - log_cumsum) * ev) / jnp.where(ev_sum == 0.0, 1.0, ev_sum))


def _reference(logits, targets, reconstruction_weight=RECONSTRUCTION_WEIGHT, eps=EPS):
    predictions, reconstructions, reconstruction_targets, modality_mask = logits
    surv = _cox_ref(predictions, targets, eps)
    mask = modality_mask.astype(jnp.float32)
    rloss, nvalid = jnp.float32(0.0), jnp.float32(0.0)
    for t in range(len(reconstructions)):
        diff = (reconstructions[t].astype(jnp.float32)
                - reconstruction_targets[t].astype(jnp.float32)[:, None, :])
        mod_mse = jnp.mean(diff * diff, axis=-1)
        combined = mask * mask[:, t:t + 1]
        valid = combined.sum()
        has = valid > 0.0
        rloss = rloss + jnp.where(has, (mod_mse * combined).sum() / jnp.where(has, valid, 1.0), 0.0)
        nvalid = nvalid + jnp.where(has, 1.0, 0.0)
    rloss = jnp.where(nvalid > 0.0, rloss / jnp.where(nvalid > 0.0, nvalid, 1.0), rloss)
    return surv + reconstruction_weight * rloss


if __name__ == "__main__":
    key = jax.random.PRNGKey(0)
    B, n_mod, D = 32, 3, 128
    k1, k2, k3, k4, k5, k6, k7 = jax.random.split(key, 7)

    predictions = jax.random.normal(k1, (B, 1), dtype=jnp.float32)        # log-hazards
    durations = jax.random.uniform(k2, (B,), minval=0.1, maxval=10.0)
    events = (jax.random.uniform(k3, (B,)) > 0.4).astype(jnp.float32)
    targets = jnp.stack([durations, events], axis=1)                      # (B, 2)

    rkeys = jax.random.split(k4, n_mod)
    reconstructions = tuple(jax.random.normal(rkeys[t], (B, n_mod, D), dtype=jnp.float32)
                            for t in range(n_mod))
    tkeys = jax.random.split(k5, n_mod)
    reconstruction_targets = tuple(jax.random.normal(tkeys[t], (B, D), dtype=jnp.float32)
                                   for t in range(n_mod))
    modality_mask = jax.random.uniform(k6, (B, n_mod)) > 0.3              # bool (B, n_mod)

    logits = (predictions, reconstructions, reconstruction_targets, modality_mask)
    ref = jax.block_until_ready(_reference(logits, targets))

    # Default (auto) tiling path.
    out = jax.block_until_ready(multimodal_survival_loss(logits, targets))
    assert jnp.allclose(out, ref, rtol=1e-5, atol=1e-5), (out, ref)

    # Multi-tile "parallel" grid path (4 batch tiles of 8 rows).
    out_tiled = jax.block_until_ready(multimodal_survival_loss(logits, targets, block_rows=8))
    assert jnp.allclose(out_tiled, ref, rtol=1e-5, atol=1e-5), (out_tiled, ref)

    # Native bf16 reconstructions (no wrapper cast/copy; cast inside the kernel).
    logits_bf16 = (predictions,
                   tuple(r.astype(jnp.bfloat16) for r in reconstructions),
                   tuple(t.astype(jnp.bfloat16) for t in reconstruction_targets),
                   modality_mask)
    out_bf16 = jax.block_until_ready(multimodal_survival_loss(logits_bf16, targets))
    assert bool(jnp.isfinite(out_bf16))

    # Cox-only (non-tuple) path with B not a multiple of 128: exercises padding
    # and the multi-row blocked-cumsum carry path.
    B2 = 300
    kk1, kk2, kk3 = jax.random.split(k7, 3)
    preds2 = jax.random.normal(kk1, (B2, 1), dtype=jnp.float32)
    targets2 = jnp.stack([jax.random.uniform(kk2, (B2,), minval=0.1, maxval=10.0),
                          (jax.random.uniform(kk3, (B2,)) > 0.4).astype(jnp.float32)], axis=1)
    out_cox = jax.block_until_ready(multimodal_survival_loss(preds2, targets2))
    ref_cox = jax.block_until_ready(_cox_ref(preds2, targets2))
    assert jnp.allclose(out_cox, ref_cox, rtol=1e-5, atol=1e-5), (out_cox, ref_cox)

    print("KERNEL_OK")
</pallas_src>

<mosaic_0001>
module attributes {stable_mosaic.version = 11 : i64} {
  func.func @_cox_kernel(%arg0: memref<1x128xf32, #tpu.memory_space<vmem>>, %arg1: memref<1x128xf32, #tpu.memory_space<vmem>>, %arg2: memref<1x1xf32, #tpu.memory_space<vmem>>) attributes {dimension_semantics = [], scalar_prefetch = 0 : i64, scratch_operands = 0 : i64, tpu.core_type = #tpu.core_type<tc>} {
    %c0 = arith.constant 0 : index
    %c0_0 = arith.constant 0 : index
    %0 = vector.load %arg0[%c0, %c0_0] : memref<1x128xf32, #tpu.memory_space<vmem>>, vector<1x128xf32>
    %c0_1 = arith.constant 0 : index
    %c0_2 = arith.constant 0 : index
    %1 = vector.load %arg1[%c0_1, %c0_2] : memref<1x128xf32, #tpu.memory_space<vmem>>, vector<1x128xf32>
    %2 = vector.shape_cast %0 : vector<1x128xf32> to vector<1x1x128xf32>
    %cst = arith.constant dense<0xFF800000> : vector<1xf32>
    %3 = vector.multi_reduction <maximumf>, %2, %cst [1, 2] : vector<1x1x128xf32> to vector<1xf32>
    %4 = vector.shape_cast %3 : vector<1xf32> to vector<1x1x1xf32>
    %5 = vector.extract %4[0, 0, 0] : f32 from vector<1x1x1xf32>
    %6 = vector.broadcast %5 : f32 to vector<1x128xf32>
    %7 = arith.subf %0, %6 : vector<1x128xf32>
    %8 = math.exp %7 : vector<1x128xf32>
    %9 = tpu.iota {dimensions = array<i32: 0>} : vector<128x128xi32>
    %10 = tpu.iota {dimensions = array<i32: 1>} : vector<128x128xi32>
    %11 = arith.cmpi sle, %9, %10 : vector<128x128xi32>
    %12 = arith.extui %11 : vector<128x128xi1> to vector<128x128xi32>
    %13 = arith.sitofp %12 : vector<128x128xi32> to vector<128x128xf32>
    %cst_3 = arith.constant dense<0.000000e+00> : vector<1x128xf32>
    %14 = tpu.matmul %8, %13, %cst_3 {dimension_numbers = #tpu.dot_dimension_numbers<[1], [0], [0], [1], [0, 0, 1, 1], [], []>} : vector<1x128xf32>, vector<128x128xf32>, vector<1x128xf32> -> vector<1x128xf32>
    %cst_4 = arith.constant 0.000000e+00 : f32
    %15 = vector.broadcast %cst_4 : f32 to vector<1x1xf32>
    %16 = vector.broadcast %15 : vector<1x1xf32> to vector<1x128xf32>
    %17 = arith.addf %14, %16 : vector<1x128xf32>
    %cst_5 = arith.constant 1.000000e-07 : f32
    %18 = vector.broadcast %cst_5 : f32 to vector<1x128xf32>
    %19 = arith.addf %17, %18 : vector<1x128xf32>
    %20 = math.log %19 : vector<1x128xf32>
    %21 = vector.broadcast %5 : f32 to vector<1x128xf32>
    %22 = arith.addf %20, %21 : vector<1x128xf32>
    %23 = vector.shape_cast %1 : vector<1x128xf32> to vector<1x1x128xf32>
    %cst_6 = arith.constant dense<0.000000e+00> : vector<1xf32>
    %24 = vector.multi_reduction <add>, %23, %cst_6 [1, 2] : vector<1x1x128xf32> to vector<1xf32>
    %25 = vector.shape_cast %24 : vector<1xf32> to vector<1x1x1xf32>
    %26 = vector.extract %25[0, 0, 0] : f32 from vector<1x1x1xf32>
    %cst_7 = arith.constant 0.000000e+00 : f32
    %27 = arith.cmpf oeq, %26, %cst_7 : f32
    %cst_8 = arith.constant 1.000000e+00 : f32
    %28 = arith.select %27, %cst_8, %26 : f32
    %29 = arith.subf %0, %22 : vector<1x128xf32>
    %30 = arith.mulf %29, %1 : vector<1x128xf32>
    %31 = vector.shape_cast %30 : vector<1x128xf32> to vector<1x1x128xf32>
    %cst_9 = arith.constant dense<0.000000e+00> : vector<1xf32>
    %32 = vector.multi_reduction <add>, %31, %cst_9 [1, 2] : vector<1x1x128xf32> to vector<1xf32>
    %33 = vector.shape_cast %32 : vector<1xf32> to vector<1x1x1xf32>
    %34 = vector.extract %33[0, 0, 0] : f32 from vector<1x1x1xf32>
    %cst_10 = arith.constant 0.000000e+00 : f32
    %35 = arith.subf %cst_10, %34 : f32
    %36 = arith.divf %35, %28 : f32
    %cst_11 = arith.constant 0.000000e+00 : f32
    %37 = arith.cmpf oeq, %26, %cst_11 : f32
    %cst_12 = arith.constant 0.000000e+00 : f32
    %38 = arith.select %37, %cst_12, %36 : f32
    %39 = vector.broadcast %38 : f32 to vector<1x1xf32>
    %c0_13 = arith.constant 0 : index
    %c0_14 = arith.constant 0 : index
    %40 = vector.load %arg2[%c0_13, %c0_14] : memref<1x1xf32, #tpu.memory_space<vmem>>, vector<1x1xf32>
    tpu.vector_store %arg2[%c0_13, %c0_14], %39 {strides = array<i32>} : memref<1x1xf32, #tpu.memory_space<vmem>>, vector<1x1xf32>,
    return
  }
}

</mosaic_0001>

<llo_original>
// kernel: tpu_custom_call.1
$region0: #{tpu_custom_call.1}
  #allocation0 [shape = 'u32[]', space=smem, size = 0x4, offset = 0x4, fixed_abs, tag = 'smem constant byte address 0x4 - core index']
  #allocation1 [shape = 'u32[144,128]{1,0:T(1,128)}', space=vmem, size = 0x12000, scoped, tag = 'internal scratch']
  %s0 = inlined_call_operand.hbm [shape: f32[1,128], index: 0, kind: input, shape index: {}]
  %s1 = inlined_call_operand.vmem [shape: f32[1,128], index: 1, kind: input, shape index: {}]
  %s2 = inlined_call_operand.hbm [shape: f32[1,1], index: 2, kind: output, shape index: {}]
  %s3 = sld [smem:[#allocation0]]
  $region22: #{tpu_custom_call.1} parent=0
    _
  %s5 = ssub.s32 1, %s3
  %s6 = scalar_select 0, %s5, %s3
  $region1: #{tpu_custom_call.1} parent=0
    #allocation2 [shape = 'u8[512]{0}', space=vmem, size = 0x400, scoped, tag = 'input window, operand 0, single buffered']
    #allocation3 [shape = 's32[1]{0}', space=sflag, size = 0x4, scoped, tag = 'scoped memory for tpu_custom_call.1']
    #allocation4 [shape = 's32[1]{0}', space=sflag, size = 0x4, scoped, tag = 'scoped memory for tpu_custom_call.1']
    #allocation5 [shape = 'u8[512]{0}', space=vmem, size = 0x400, scoped, tag = 'output window, operand 0, single buffered']
    %7 = vsyncpa [#allocation3], 0
    %8 = vsyncpa [#allocation4], 0
    // Predicated region
    $region2: #{tpu_custom_call.1} parent=1 // pred_check
      _
    $region3: #{tpu_custom_call.1} parent=1 // pred_check_branch
      %10 = sbr.rel (0) target = $region5
    $region4: #{tpu_custom_call.1} parent=1 // pred_region
      %s12 = ssub.s32 16, 16
      %13 = vsyncadd [#allocation3], %s12
      %s15 = sshll.u32 [#allocation2], 4
      %s16 = int_to_ptr.vmem [resolvable:$true] %s15
      %18 = dma.hbm_to_vmem [thread:$0]  %s0, 16, %s16, [#allocation3]
    $region5: #{tpu_custom_call.1} parent=1 // pred_fallthru
      _
    // Predicated region
    $region6: #{tpu_custom_call.1} parent=1 // pred_check
      _
    $region7: #{tpu_custom_call.1} parent=1 // pred_check_branch
      %20 = sbr.rel (0) target = $region9
    $region8: #{tpu_custom_call.1} parent=1 // pred_region
      _
    $region9: #{tpu_custom_call.1} parent=1 // pred_fallthru
      _
    // Predicated region
    $region10: #{tpu_custom_call.1} parent=1 // pred_check
      _
    $region11: #{tpu_custom_call.1} parent=1 // pred_check_branch
      %22 = sbr.rel (0) target = $region13
    $region12: #{tpu_custom_call.1} parent=1 // pred_region
      %23 = dma.done [#allocation3], 16
    $region13: #{tpu_custom_call.1} parent=1 // pred_fallthru
      _
    %v24 = vld [vmem:[#allocation2] sm:$0x1]
    %v25 = vld [vmem:[%s1] sm:$0x1]
    %vm26 = vcmask 1040384
    %v27 = vsel %vm26, %v24, -inf
    %28 = vmax.xlane.f32.xlu0 %v27
    %v29 = vpop.xlane.xlu0 %28
    %v30 = vrot.slane %v29, 4
    %v31 = vmax.f32 %v29, %v30
    %v32 = vrot.slane %v31, 2
    %v33 = vmax.f32 %v31, %v32
    %v34 = vrot.slane %v33, 1
    %v35 = vmax.f32 %v33, %v34
    %s36 = vtos %v35
    %v37 = vstv %s36
    %v38 = vsub.f32 %v24, %v37
    %v39 = vmul.f32 %v38, 1.442695
    %v40 = vpow.pop %v39
    %v41 = vlaneseq
    %v42 = vshrl.u32 %v41, 7
    %v43 = vadd.s32 %v42, 8
    %v44 = vadd.s32 %v42, 16
    %v45 = vadd.s32 %v42, 24
    %v46 = vadd.s32 %v42, 32
    %v47 = vadd.s32 %v42, 40
    %v48 = vadd.s32 %v42, 48
    %v49 = vadd.s32 %v42, 56
    %v50 = vadd.s32 %v42, 64
    %v51 = vadd.s32 %v42, 72
    %v52 = vadd.s32 %v42, 80
    %v53 = vadd.s32 %v42, 88
    %v54 = vadd.s32 %v42, 96
    %v55 = vadd.s32 %v42, 104
    %v56 = vadd.s32 %v42, 112
    %v57 = vadd.s32 %v42, 120
    %v58 = vlaneseq
    %v59 = vand.u32 %v58, 127
    %vm60 = vcmp.le.s32.totalorder %v42, %v59
    %vm61 = vcmp.le.s32.totalorder %v43, %v59
    %vm62 = vcmp.le.s32.totalorder %v44, %v59
    %vm63 = vcmp.le.s32.totalorder %v45, %v59
    %vm64 = vcmp.le.s32.totalorder %v46, %v59
    %vm65 = vcmp.le.s32.totalorder %v47, %v59
    %vm66 = vcmp.le.s32.totalorder %v48, %v59
    %vm67 = vcmp.le.s32.totalorder %v49, %v59
    %vm68 = vcmp.le.s32.totalorder %v50, %v59
    %vm69 = vcmp.le.s32.totalorder %v51, %v59
    %vm70 = vcmp.le.s32.totalorder %v52, %v59
    %vm71 = vcmp.le.s32.totalorder %v53, %v59
    %vm72 = vcmp.le.s32.totalorder %v54, %v59
    %vm73 = vcmp.le.s32.totalorder %v55, %v59
    %vm74 = vcmp.le.s32.totalorder %v56, %v59
    %vm75 = vcmp.le.s32.totalorder %v57, %v59
    %v76 = vsel %vm60, 1, 0
    %v77 = vsel %vm61, 1, 0
    %v78 = vsel %vm62, 1, 0
    %v79 = vsel %vm63, 1, 0
    %v80 = vsel %vm64, 1, 0
    %v81 = vsel %vm65, 1, 0
    %v82 = vsel %vm66, 1, 0
    %v83 = vsel %vm67, 1, 0
    %v84 = vsel %vm68, 1, 0
    %v85 = vsel %vm69, 1, 0
    %v86 = vsel %vm70, 1, 0
    %v87 = vsel %vm71, 1, 0
    %v88 = vsel %vm72, 1, 0
    %v89 = vsel %vm73, 1, 0
    %v90 = vsel %vm74, 1, 0
    %v91 = vsel %vm75, 1, 0
    %v92 = vcvt.s32.f32 %v76
    %v93 = vcvt.s32.f32 %v77
    %v94 = vcvt.s32.f32 %v78
    %v95 = vcvt.s32.f32 %v79
    %v96 = vcvt.s32.f32 %v80
    %v97 = vcvt.s32.f32 %v81
    %v98 = vcvt.s32.f32 %v82
    %v99 = vcvt.s32.f32 %v83
    %v100 = vcvt.s32.f32 %v84
    %v101 = vcvt.s32.f32 %v85
    %v102 = vcvt.s32.f32 %v86
    %v103 = vcvt.s32.f32 %v87
    %v104 = vcvt.s32.f32 %v88
    %v105 = vcvt.s32.f32 %v89
    %v106 = vcvt.s32.f32 %v90
    %v107 = vcvt.s32.f32 %v91
    %108 = vmatprep.subr.mxu0 0.0
    %109 = vmatpush1.msra.mxu0 %v92
    %110 = vmatprep.subr.mxu0 0.0
    %111 = vmatpush1.msra.mxu0 %v93
    %112 = vmatprep.subr.mxu0 0.0
    %113 = vmatpush1.msra.mxu0 %v94
    %114 = vmatprep.subr.mxu0 0.0
    %115 = vmatpush1.msra.mxu0 %v95
    %116 = vmatprep.subr.mxu0 0.0
    %117 = vmatpush1.msra.mxu0 %v96
    %118 = vmatprep.subr.mxu0 0.0
    %119 = vmatpush1.msra.mxu0 %v97
    %120 = vmatprep.subr.mxu0 0.0
    %121 = vmatpush1.msra.mxu0 %v98
    %122 = vmatprep.subr.mxu0 0.0
    %123 = vmatpush1.msra.mxu0 %v99
    %124 = vmatprep.subr.mxu0 0.0
    %125 = vmatpush1.msra.mxu0 %v100
    %126 = vmatprep.subr.mxu0 0.0
    %127 = vmatpush1.msra.mxu0 %v101
    %128 = vmatprep.subr.mxu0 0.0
    %129 = vmatpush1.msra.mxu0 %v102
    %130 = vmatprep.subr.mxu0 0.0
    %131 = vmatpush1.msra.mxu0 %v103
    %132 = vmatprep.subr.mxu0 0.0
    %133 = vmatpush1.msra.mxu0 %v104
    %134 = vmatprep.subr.mxu0 0.0
    %135 = vmatpush1.msra.mxu0 %v105
    %136 = vmatprep.subr.mxu0 0.0
    %137 = vmatpush1.msra.mxu0 %v106
    %138 = vmatprep.subr.mxu0 0.0
    %139 = vmatpush1.msra.mxu0 %v107
    %140 = vmatprep.subr.mxu0 0.0
    %141 = vmatpush1.msra.mxu0 0.0
    %142 = vmatprep.subr.mxu0 0.0
    %143 = vmatpush1.msra.mxu0 0.0
    %144 = vmatprep.subr.mxu0 0.0
    %145 = vmatpush1.msra.mxu0 0.0
    %146 = vmatprep.subr.mxu0 0.0
    %147 = vmatpush1.msra.mxu0 0.0
    %148 = vmatprep.subr.mxu0 0.0
    %149 = vmatpush1.msra.mxu0 0.0
    %150 = vmatprep.subr.mxu0 0.0
    %151 = vmatpush1.msra.mxu0 0.0
    %152 = vmatprep.subr.mxu0 0.0
    %153 = vmatpush1.msra.mxu0 0.0
    %154 = vmatprep.subr.mxu0 0.0
    %155 = vmatpush1.msra.mxu0 0.0
    %156 = vmatprep.subr.mxu0 0.0
    %157 = vmatpush1.msra.mxu0 0.0
    %158 = vmatprep.subr.mxu0 0.0
    %159 = vmatpush1.msra.mxu0 0.0
    %160 = vmatprep.subr.mxu0 0.0
    %161 = vmatpush1.msra.mxu0 0.0
    %162 = vmatprep.subr.mxu0 0.0
    %163 = vmatpush1.msra.mxu0 0.0
    %164 = vmatprep.subr.mxu0 0.0
    %165 = vmatpush1.msra.mxu0 0.0
    %166 = vmatprep.subr.mxu0 0.0
    %167 = vmatpush1.msra.mxu0 0.0
    %168 = vmatprep.subr.mxu0 0.0
    %169 = vmatpush1.msra.mxu0 0.0
    %170 = vmatprep.subr.mxu0 0.0
    %171 = vmatpush1.msra.mxu0 0.0
    %172 = vmatprep.mubr.f32.mxu0 0.0
    %173 = vmatmul.mubr.f32.gmra.mrb[0].mxu0 %v40
    %v174 = vpop.f32.mrb[0].mxu0
    %v175 = vadd.f32 1e-07, %v174
    %v176 = vpop.f32.mrb[0].mxu0
    %177 = vdwg.mxu0
    %v178 = vlog2.pop %v175
    %v179 = vmul.f32 %v178, 0.6931472
    %v180 = vadd.f32 %v179, %v37
    %v181 = vsel %vm26, %v25, 0.0
    %182 = vadd.xlane.f32.xlu0 %v181
    %v183 = vpop.xlane.xlu0 %182
    %v184 = vrot.slane %v183, 4
    %v185 = vadd.f32 %v183, %v184
    %v186 = vrot.slane %v185, 2
    %v187 = vadd.f32 %v185, %v186
    %v188 = vrot.slane %v187, 1
    %v189 = vadd.f32 %v187, %v188
    %s190 = vtos %v189
    %p191 = scmp.eq.f32.partialorder %s190, 0.0
    %s192 = scalar_select %p191, 1.0, %s190
    %v193 = vsub.f32 %v24, %v180
    %v194 = vmul.f32 %v193, %v25
    %v195 = vsel %vm26, %v194, 0.0
    %196 = vadd.xlane.f32.xlu0 %v195
    %v197 = vpop.xlane.xlu0 %196
    %v198 = vrot.slane %v197, 4
    %v199 = vadd.f32 %v197, %v198
    %v200 = vrot.slane %v199, 2
    %v201 = vadd.f32 %v199, %v200
    %v202 = vrot.slane %v201, 1
    %v203 = vadd.f32 %v201, %v202
    %s204 = vtos %v203
    %s205 = ssub.f32 0.0, %s204
    %v206 = vstv %s192
    %v207 = vrcp.pop %v206
    %s208 = vtos %v207
    %s209 = smul.f32 %s205, %s208
    %s210 = scalar_select %p191, 0.0, %s209
    %v211 = vstv %s210
    %vm212 = vcmask 0
    %213 = vst.msk [vmem:[#allocation5] sm:$0x1] %vm212, %v211
    // Predicated region
    $region14: #{tpu_custom_call.1} parent=1 // pred_check
      _
    $region15: #{tpu_custom_call.1} parent=1 // pred_check_branch
      %215 = sbr.rel (0) target = $region17
    $region16: #{tpu_custom_call.1} parent=1 // pred_region
      %s217 = ssub.s32 16, 16
      %218 = vsyncadd [#allocation4], %s217
      %s220 = sshll.u32 [#allocation5], 4
      %s221 = int_to_ptr.vmem [resolvable:$true] %s220
      %223 = dma.vmem_to_hbm [thread:$0]  %s221, 16, %s2, [#allocation4]
    $region17: #{tpu_custom_call.1} parent=1 // pred_fallthru
      _
    // Predicated region
    $region18: #{tpu_custom_call.1} parent=1 // pred_check
      _
    $region19: #{tpu_custom_call.1} parent=1 // pred_check_branch
      %225 = sbr.rel (0) target = $region21
    $region20: #{tpu_custom_call.1} parent=1 // pred_region
      %226 = dma.done [#allocation4], 16
    $region21: #{tpu_custom_call.1} parent=1 // pred_fallthru
      _
    %227 = vsyncpa [#allocation3], 1
    %228 = vsyncpa [#allocation4], 1

</llo_original>
